<compile_context>
chip_gen: v7x
topology: tpu7x:2x2x1
jax: 0.10.0
libtpu: 0.0.40
codegen_flags: <defaults>
</compile_context>

<pallas_src>
import functools

import jax
import jax.numpy as jnp
from jax.experimental import pallas as pl
from jax.experimental.pallas import tpu as pltpu


def _round_up(x, m):
    return ((x + m - 1) // m) * m


# ------------------------------ kernels -------------------------------------

def _typ_embed_eval_kernel(f_ref, w_ref, o_ref):
    # (bb, F_pad) @ (F_pad, E) -> (bb, E).  The fused bias lives in row F of
    # w_ref and is selected by the constant-1.0 feature column, so there is no
    # separate bias input / broadcast-add.
    f = f_ref[...].astype(jnp.float32)
    y = jnp.dot(f, w_ref[...], preferred_element_type=jnp.float32)
    o_ref[...] = jnp.maximum(y, 0.0).astype(o_ref.dtype)


def _typ_embed_train_kernel(f_ref, w_ref, bits_ref, o_ref, *,
                            keep_threshold, inv_keep):
    f = f_ref[...].astype(jnp.float32)
    y = jnp.dot(f, w_ref[...], preferred_element_type=jnp.float32)
    y = jnp.maximum(y, 0.0)
    # Inverted dropout: drop iff bits < p * 2^32  (bits are uniform uint32
    # generated in the wrapper -> works on TPU and in interpret mode).
    keep = bits_ref[...] >= jnp.uint32(keep_threshold)
    o_ref[...] = jnp.where(keep, y * inv_keep, 0.0).astype(o_ref.dtype)


# ------------------------- one-time parameter prep --------------------------

def prepare_typ_embed_params(w1, b1, w2, b2):
    """Hoisted (call once): fuse linear1/linear2 and fold the bias.

    relu((f @ w1 + b1) @ w2 + b2) == relu([f, 1] @ [[w1 @ w2], [b1 @ w2 + b2]])

    Weights are (in, out), i.e. PyTorch weight.T.  Returns w_aug of shape
    (F_pad, E) float32 with F_pad = round_up(F + 1, 128); rows [:F] hold the
    fused weight, row F holds the fused bias, remaining rows are zero.

    Note: the algebraic fusion reassociates the f32 accumulation vs PyTorch's
    two sequential GEMMs (tiny differences that grow with H/F).
    """
    w1 = jnp.asarray(w1, jnp.float32)
    w2 = jnp.asarray(w2, jnp.float32)
    F, H = w1.shape
    _, E = w2.shape
    b1 = jnp.reshape(jnp.asarray(b1, jnp.float32), (1, H))
    b2 = jnp.reshape(jnp.asarray(b2, jnp.float32), (1, E))

    w_fused = w1 @ w2                       # (F, E)
    b_fused = b1 @ w2 + b2                  # (1, E)

    F_pad = _round_up(F + 1, 128)           # lane-dense contraction dim (+1 bias row)
    w_aug = jnp.zeros((F_pad, E), jnp.float32)
    w_aug = w_aug.at[:F, :].set(w_fused).at[F, :].set(b_fused[0])
    return w_aug


# ------------------------------ forward wrapper -----------------------------

def typological_language_embed(f_vec, w_aug, *, dropout_p=0.25, training=False,
                               rng_key=None, block_b=512,
                               feature_dtype=jnp.bfloat16):
    """Fused TypologicalLanguageEmbed forward.

    f_vec : (F,) or (B, F) typological feature vector(s).  lang2vec features
            are binary, so the default bfloat16 streaming dtype is exact; pass
            feature_dtype=jnp.float32 for arbitrary real-valued features.
    w_aug : (F_pad, E) from prepare_typ_embed_params (precomputed once).
    Returns (E,) or (B, E) float32.
    """
    f_vec = jnp.asarray(f_vec)
    squeeze = f_vec.ndim == 1
    if squeeze:
        f_vec = f_vec[None, :]
    B, F = f_vec.shape
    F_pad, E = w_aug.shape
    assert F + 1 <= F_pad, "w_aug is too small for this feature width"

    # Batch tiling only; E stays unpadded (block dim == full array dim).
    bb = block_b if B >= block_b else _round_up(B, 8)
    B_pad = _round_up(B, bb)
    nb = B_pad // bb

    # Per-call input padding: real features + constant 1.0 column at index F
    # (selects the fused-bias row of w_aug); padded batch rows stay zero.
    f_aug = jnp.zeros((B_pad, F_pad), feature_dtype)
    f_aug = f_aug.at[:B, :F].set(f_vec.astype(feature_dtype))
    f_aug = f_aug.at[:B, F].set(1.0)

    out_shape = jax.ShapeDtypeStruct((B_pad, E), jnp.float32)
    compiler_params = pltpu.CompilerParams(
        dimension_semantics=("parallel",))   # only matters when nb >= 2

    f_spec = pl.BlockSpec((bb, F_pad), lambda i: (i, 0))
    w_spec = pl.BlockSpec((F_pad, E), lambda i: (0, 0))
    o_spec = pl.BlockSpec((bb, E), lambda i: (i, 0))

    if training and dropout_p > 0.0:
        if dropout_p >= 1.0:
            out = jnp.zeros((B_pad, E), jnp.float32)
        else:
            if rng_key is None:
                rng_key = jax.random.PRNGKey(0)
            keep_threshold = min(int(round(dropout_p * 4294967296.0)), 4294967295)
            bits = jax.random.bits(rng_key, (B_pad, E), dtype=jnp.uint32)
            kernel = functools.partial(
                _typ_embed_train_kernel,
                keep_threshold=keep_threshold,
                inv_keep=float(1.0 / (1.0 - dropout_p)))
            out = pl.pallas_call(
                kernel,
                out_shape=out_shape,
                grid=(nb,),
                in_specs=[f_spec, w_spec,
                          pl.BlockSpec((bb, E), lambda i: (i, 0))],
                out_specs=o_spec,
                compiler_params=compiler_params,
            )(f_aug, w_aug, bits)
    else:
        out = pl.pallas_call(
            _typ_embed_eval_kernel,
            out_shape=out_shape,
            grid=(nb,),
            in_specs=[f_spec, w_spec],
            out_specs=o_spec,
            compiler_params=compiler_params,
        )(f_aug, w_aug)

    if B_pad != B:
        out = out[:B]
    return out[0] if squeeze else out


# ------------------------------ param init ----------------------------------

def init_params(key, num_typ_features, hidden_size, typ_embed_size):
    """nn.Linear default init: U(-1/sqrt(fan_in), 1/sqrt(fan_in)); (in, out) layout."""
    k1, k2, k3, k4 = jax.random.split(key, 4)
    b1_bound = 1.0 / jnp.sqrt(num_typ_features)
    b2_bound = 1.0 / jnp.sqrt(hidden_size)
    w1 = jax.random.uniform(k1, (num_typ_features, hidden_size),
                            jnp.float32, -b1_bound, b1_bound)
    b1 = jax.random.uniform(k2, (1, hidden_size),
                            jnp.float32, -b1_bound, b1_bound)
    w2 = jax.random.uniform(k3, (hidden_size, typ_embed_size),
                            jnp.float32, -b2_bound, b2_bound)
    b2 = jax.random.uniform(k4, (1, typ_embed_size),
                            jnp.float32, -b2_bound, b2_bound)
    return w1, b1, w2, b2


if __name__ == "__main__":
    num_typ_features = 64   # size of the lang2vec feature vector (synthetic)
    hidden_size = 32
    typ_embed_size = 32
    batch = 8               # a handful of synthetic "languages"

    key = jax.random.PRNGKey(0)
    k_feat, k_param, k_drop = jax.random.split(key, 3)

    # Synthetic binary typological feature vectors (lang2vec features are 0/1).
    f_vec = jax.random.bernoulli(
        k_feat, p=0.5, shape=(batch, num_typ_features)).astype(jnp.float32)

    w1, b1, w2, b2 = init_params(k_param, num_typ_features,
                                 hidden_size, typ_embed_size)

    # One-time (hoisted out of the hot path) weight fusion + padding.
    w_aug = prepare_typ_embed_params(w1, b1, w2, b2)

    # Eval mode (dropout is identity, matching nn.Dropout.eval()).
    out = typological_language_embed(f_vec, w_aug, dropout_p=0.25, training=False)
    out = jax.block_until_ready(out)

    ref = jnp.maximum((f_vec @ w1 + b1) @ w2 + b2, 0.0)
    assert out.shape == (batch, typ_embed_size)
    assert jnp.allclose(out, ref, atol=1e-4, rtol=1e-4), \
        float(jnp.max(jnp.abs(out - ref)))

    # Single-language (1D) path matches the original forward() signature.
    out1 = typological_language_embed(f_vec[0], w_aug, training=False)
    out1 = jax.block_until_ready(out1)
    assert out1.shape == (typ_embed_size,)
    assert jnp.allclose(out1, ref[0], atol=1e-4, rtol=1e-4)

    # Training mode: each element is either dropped (0) or scaled by 1/(1-p).
    out_tr = typological_language_embed(f_vec, w_aug, dropout_p=0.25,
                                        training=True, rng_key=k_drop)
    out_tr = jax.block_until_ready(out_tr)
    assert out_tr.shape == (batch, typ_embed_size)
    scaled = ref / (1.0 - 0.25)
    ok = (jnp.isclose(out_tr, 0.0, atol=1e-6)
          | jnp.isclose(out_tr, scaled, atol=1e-4, rtol=1e-4))
    assert bool(jnp.all(ok))

    print("KERNEL_OK")
</pallas_src>

<mosaic_0001>
module attributes {stable_mosaic.version = 11 : i64} {
  func.func @_typ_embed_eval_kernel(%arg0: i32, %arg1: memref<8x128xbf16, #tpu.memory_space<vmem>>, %arg2: memref<128x32xf32, #tpu.memory_space<vmem>>, %arg3: memref<8x32xf32, #tpu.memory_space<vmem>>) attributes {dimension_semantics = [#tpu.dimension_semantics<parallel>], iteration_bounds = array<i64: 1>, scalar_prefetch = 0 : i64, scratch_operands = 0 : i64, tpu.core_type = #tpu.core_type<tc>, window_params = [{transform_indices = @transform_0, window_bounds = array<i64: 8, 128>}, {pipeline_mode = #tpu.pipeline_mode<synchronous>, transform_indices = @transform_1, window_bounds = array<i64: 128, 32>}, {transform_indices = @transform_2, window_bounds = array<i64: 8, 32>}]} {
    %c0 = arith.constant 0 : index
    %c0_0 = arith.constant 0 : index
    %0 = vector.load %arg1[%c0, %c0_0] : memref<8x128xbf16, #tpu.memory_space<vmem>>, vector<8x128xbf16>
    %1 = arith.extf %0 : vector<8x128xbf16> to vector<8x128xf32>
    %c0_1 = arith.constant 0 : index
    %c0_2 = arith.constant 0 : index
    %2 = vector.load %arg2[%c0_1, %c0_2] : memref<128x32xf32, #tpu.memory_space<vmem>>, vector<128x32xf32>
    %cst = arith.constant dense<0.000000e+00> : vector<8x32xf32>
    %3 = tpu.matmul %1, %2, %cst {dimension_numbers = #tpu.dot_dimension_numbers<[1], [0], [0], [1], [0, 0, 1, 1], [], []>} : vector<8x128xf32>, vector<128x32xf32>, vector<8x32xf32> -> vector<8x32xf32>
    %cst_3 = arith.constant 0.000000e+00 : f32
    %4 = vector.broadcast %cst_3 : f32 to vector<8x32xf32>
    %5 = arith.maximumf %3, %4 : vector<8x32xf32>
    %c0_4 = arith.constant 0 : index
    %c0_5 = arith.constant 0 : index
    %6 = vector.load %arg3[%c0_4, %c0_5] : memref<8x32xf32, #tpu.memory_space<vmem>>, vector<8x32xf32>
    tpu.vector_store %arg3[%c0_4, %c0_5], %5 {strides = array<i32>} : memref<8x32xf32, #tpu.memory_space<vmem>>, vector<8x32xf32>,
    return
  }
  func.func @transform_0(%arg0: i32) -> (i32, i32) {
    %c0_i32 = arith.constant 0 : i32
    %c0_i32_0 = arith.constant 0 : i32
    return %arg0, %c0_i32 : i32, i32
  }
  func.func @transform_1(%arg0: i32) -> (i32, i32) {
    %c0_i32 = arith.constant 0 : i32
    %c0_i32_0 = arith.constant 0 : i32
    %c0_i32_1 = arith.constant 0 : i32
    return %c0_i32, %c0_i32_0 : i32, i32
  }
  func.func @transform_2(%arg0: i32) -> (i32, i32) {
    %c0_i32 = arith.constant 0 : i32
    %c0_i32_0 = arith.constant 0 : i32
    return %arg0, %c0_i32 : i32, i32
  }
}

</mosaic_0001>

<llo_original>
// kernel: tpu_custom_call.1
$region0: #{tpu_custom_call.1}
  #allocation0 [shape = 'u32[]', space=smem, size = 0x4, offset = 0x4, fixed_abs, tag = 'smem constant byte address 0x4 - core index']
  #allocation1 [shape = 'u32[144,128]{1,0:T(1,128)}', space=vmem, size = 0x12000, scoped, tag = 'internal scratch']
  %s0 = inlined_call_operand.vmem [shape: bf16[8,128], index: 0, kind: input, shape index: {}]
  %s1 = inlined_call_operand.vmem [shape: f32[128,32], index: 1, kind: input, shape index: {}]
  %s2 = inlined_call_operand.hbm [shape: f32[8,32], index: 2, kind: output, shape index: {}]
  %s3 = sld [smem:[#allocation0]]
  $region18: #{tpu_custom_call.1} parent=0
    _
  %s5 = ssub.s32 1, %s3
  %s6 = scalar_select 0, %s5, %s3
  $region1: #{tpu_custom_call.1} parent=0
    #allocation2 [shape = 'u8[4096]{0}', space=vmem, size = 0x1000, scoped, tag = 'output window, operand 0, single buffered']
    #allocation3 [shape = 's32[1]{0}', space=sflag, size = 0x4, scoped, tag = 'scoped memory for tpu_custom_call.1']
    %7 = vsyncpa [#allocation3], 0
    // Predicated region
    $region2: #{tpu_custom_call.1} parent=1 // pred_check
      _
    $region3: #{tpu_custom_call.1} parent=1 // pred_check_branch
      %9 = sbr.rel (0) target = $region5
    $region4: #{tpu_custom_call.1} parent=1 // pred_region
      _
    $region5: #{tpu_custom_call.1} parent=1 // pred_fallthru
      _
    // Predicated region
    $region6: #{tpu_custom_call.1} parent=1 // pred_check
      _
    $region7: #{tpu_custom_call.1} parent=1 // pred_check_branch
      %11 = sbr.rel (0) target = $region9
    $region8: #{tpu_custom_call.1} parent=1 // pred_region
      _
    $region9: #{tpu_custom_call.1} parent=1 // pred_fallthru
      _
    %v12 = vld [vmem:[%s0] sm:$0xf]
    %v13 = vunpack.c.l.bf16 %v12
    %v14 = vld [vmem:[%s1] sm:$0xff]
    %v15 = vld [vmem:[%s1 + $0x8] sm:$0xff]
    %v16 = vld [vmem:[%s1 + $0x10] sm:$0xff]
    %v17 = vld [vmem:[%s1 + $0x18] sm:$0xff]
    %v18 = vld [vmem:[%s1 + $0x20] sm:$0xff]
    %v19 = vld [vmem:[%s1 + $0x28] sm:$0xff]
    %v20 = vld [vmem:[%s1 + $0x30] sm:$0xff]
    %v21 = vld [vmem:[%s1 + $0x38] sm:$0xff]
    %v22 = vld [vmem:[%s1 + $0x40] sm:$0xff]
    %v23 = vld [vmem:[%s1 + $0x48] sm:$0xff]
    %v24 = vld [vmem:[%s1 + $0x50] sm:$0xff]
    %v25 = vld [vmem:[%s1 + $0x58] sm:$0xff]
    %v26 = vld [vmem:[%s1 + $0x60] sm:$0xff]
    %v27 = vld [vmem:[%s1 + $0x68] sm:$0xff]
    %v28 = vld [vmem:[%s1 + $0x70] sm:$0xff]
    %v29 = vld [vmem:[%s1 + $0x78] sm:$0xff]
    %30 = vmatprep.subr.mxu0 0.0
    %31 = vmatpush1.msra.mxu0 %v14
    %32 = vmatprep.subr.mxu0 0.0
    %33 = vmatpush1.msra.mxu0 %v15
    %34 = vmatprep.subr.mxu0 0.0
    %35 = vmatpush1.msra.mxu0 %v16
    %36 = vmatprep.subr.mxu0 0.0
    %37 = vmatpush1.msra.mxu0 %v17
    %38 = vmatprep.subr.mxu0 0.0
    %39 = vmatpush1.msra.mxu0 %v18
    %40 = vmatprep.subr.mxu0 0.0
    %41 = vmatpush1.msra.mxu0 %v19
    %42 = vmatprep.subr.mxu0 0.0
    %43 = vmatpush1.msra.mxu0 %v20
    %44 = vmatprep.subr.mxu0 0.0
    %45 = vmatpush1.msra.mxu0 %v21
    %46 = vmatprep.subr.mxu0 0.0
    %47 = vmatpush1.msra.mxu0 %v22
    %48 = vmatprep.subr.mxu0 0.0
    %49 = vmatpush1.msra.mxu0 %v23
    %50 = vmatprep.subr.mxu0 0.0
    %51 = vmatpush1.msra.mxu0 %v24
    %52 = vmatprep.subr.mxu0 0.0
    %53 = vmatpush1.msra.mxu0 %v25
    %54 = vmatprep.subr.mxu0 0.0
    %55 = vmatpush1.msra.mxu0 %v26
    %56 = vmatprep.subr.mxu0 0.0
    %57 = vmatpush1.msra.mxu0 %v27
    %58 = vmatprep.subr.mxu0 0.0
    %59 = vmatpush1.msra.mxu0 %v28
    %60 = vmatprep.subr.mxu0 0.0
    %61 = vmatpush1.msra.mxu0 %v29
    %62 = vmatprep.subr.mxu0 0.0
    %63 = vmatpush1.msra.mxu0 0.0
    %64 = vmatprep.subr.mxu0 0.0
    %65 = vmatpush1.msra.mxu0 0.0
    %66 = vmatprep.subr.mxu0 0.0
    %67 = vmatpush1.msra.mxu0 0.0
    %68 = vmatprep.subr.mxu0 0.0
    %69 = vmatpush1.msra.mxu0 0.0
    %70 = vmatprep.subr.mxu0 0.0
    %71 = vmatpush1.msra.mxu0 0.0
    %72 = vmatprep.subr.mxu0 0.0
    %73 = vmatpush1.msra.mxu0 0.0
    %74 = vmatprep.subr.mxu0 0.0
    %75 = vmatpush1.msra.mxu0 0.0
    %76 = vmatprep.subr.mxu0 0.0
    %77 = vmatpush1.msra.mxu0 0.0
    %78 = vmatprep.subr.mxu0 0.0
    %79 = vmatpush1.msra.mxu0 0.0
    %80 = vmatprep.subr.mxu0 0.0
    %81 = vmatpush1.msra.mxu0 0.0
    %82 = vmatprep.subr.mxu0 0.0
    %83 = vmatpush1.msra.mxu0 0.0
    %84 = vmatprep.subr.mxu0 0.0
    %85 = vmatpush1.msra.mxu0 0.0
    %86 = vmatprep.subr.mxu0 0.0
    %87 = vmatpush1.msra.mxu0 0.0
    %88 = vmatprep.subr.mxu0 0.0
    %89 = vmatpush1.msra.mxu0 0.0
    %90 = vmatprep.subr.mxu0 0.0
    %91 = vmatpush1.msra.mxu0 0.0
    %92 = vmatprep.subr.mxu0 0.0
    %93 = vmatpush1.msra.mxu0 0.0
    %94 = vmatprep.mubr.f32.mxu0 0.0
    %95 = vmatmul.mubr.f32.gmra.mrb[0].mxu0 %v13
    %v96 = vpop.f32.mrb[0].mxu0
    %v97 = vadd.f32 0.0, %v96
    %v98 = vpop.f32.mrb[0].mxu0
    %99 = vdwg.mxu0
    %v100 = vmax.f32 %v97, 0.0
    %vm101 = vcmask 261120
    %102 = vst.msk [vmem:[#allocation2] sm:$0xff] %vm101, %v100
    // Predicated region
    $region10: #{tpu_custom_call.1} parent=1 // pred_check
      _
    $region11: #{tpu_custom_call.1} parent=1 // pred_check_branch
      %104 = sbr.rel (0) target = $region13
    $region12: #{tpu_custom_call.1} parent=1 // pred_region
      %s106 = ssub.s32 128, 128
      %107 = vsyncadd [#allocation3], %s106
      %s109 = sshll.u32 [#allocation2], 4
      %s110 = int_to_ptr.vmem [resolvable:$true] %s109
      %112 = dma.vmem_to_hbm [thread:$0]  %s110, 128, %s2, [#allocation3]
    $region13: #{tpu_custom_call.1} parent=1 // pred_fallthru
      _
    // Predicated region
    $region14: #{tpu_custom_call.1} parent=1 // pred_check
      _
    $region15: #{tpu_custom_call.1} parent=1 // pred_check_branch
      %114 = sbr.rel (0) target = $region17
    $region16: #{tpu_custom_call.1} parent=1 // pred_region
      %115 = dma.done [#allocation3], 128
    $region17: #{tpu_custom_call.1} parent=1 // pred_fallthru
      _
    %116 = vsyncpa [#allocation3], 1

</llo_original>
